<compile_context>
chip_gen: v6e
topology: v6e:2x2x1
jax: 0.10.0
libtpu: 0.0.40
codegen_flags: <defaults>
</compile_context>

<pallas_src>
import functools

import jax
import jax.numpy as jnp
from jax.experimental import pallas as pl
from jax.experimental.pallas import tpu as pltpu


_D_OUT_PAD = 8          # output lanes kept in HBM (>= real d_out of 2)
_MAX_TB = 4096          # upper bound on the batch tile (rows)
_MIN_GRID_STEPS = 4     # keep >= 4 parallel grid steps (v7x has 2 TensorCores)


def _round_up(x: int, m: int) -> int:
    return ((x + m - 1) // m) * m


def _mlp_kernel(x_ref, w1_ref, b1_ref, w2_ref, b2_ref, o_ref):
    # f32 -> bf16 cast of the activation tile happens here (free VPU filler under
    # the DMA bottleneck) instead of as a separate XLA pass over HBM.
    x = x_ref[...].astype(jnp.bfloat16)
    # fc1: [tb, d_in](bf16) @ [d_in, 128](bf16) -> f32 acc, + bias
    h = jnp.dot(x, w1_ref[...], preferred_element_type=jnp.float32) + b1_ref[...]
    # ReLU; Dropout(p=0.5) is the identity in eval mode.
    # TODO(synk): train-mode dropout would use pltpu.prng_seed + pltpu.prng_random_bits.
    h = jnp.maximum(h, 0.0)
    # fc2 (8-lane padded): [tb, 128](bf16) @ [128, 8](bf16) -> f32 acc, + bias
    o = jnp.dot(h.astype(jnp.bfloat16), w2_ref[...],
                preferred_element_type=jnp.float32) + b2_ref[...]
    o_ref[...] = o.astype(o_ref.dtype)


def prepack_params(w1, b1, w2, b2):
    """One-time packing (do NOT call per forward): bf16 weights, f32 biases,
    fc2 weight/bias zero-padded to _D_OUT_PAD lanes.
    w1: [d_in, 128], w2: [128, d_out]  (stored input-major / pre-transposed)."""
    d_hid = w1.shape[1]
    d_out = w2.shape[1]
    w1_bf = w1.astype(jnp.bfloat16)
    b1_2d = b1.reshape(1, d_hid).astype(jnp.float32)
    w2_pad = jnp.zeros((d_hid, _D_OUT_PAD), jnp.bfloat16).at[:, :d_out].set(
        w2.astype(jnp.bfloat16))
    b2_pad = jnp.zeros((1, _D_OUT_PAD), jnp.float32).at[:, :d_out].set(
        b2.astype(jnp.float32))
    return w1_bf, b1_2d, w2_pad, b2_pad, d_out


@functools.partial(jax.jit, static_argnames=("d_out", "tb"))
def server_cnn_forward_pallas(x, w1_bf, b1_2d, w2_pad, b2_pad, *, d_out=2, tb=None):
    """x: [B, n_frequencies*16] f32 (cast to bf16 inside the kernel).
    Returns [B, d_out] f32."""
    B, d_in = x.shape
    d_hid = w1_bf.shape[1]

    if tb is None:
        # Big tiles amortize the ~0.35 us/step pipeline overhead; cap so at least
        # _MIN_GRID_STEPS parallel steps remain for v7x's two TensorCores.
        tb = max(256, min(_MAX_TB, _round_up(pl.cdiv(B, _MIN_GRID_STEPS), 256)))
    tb = min(tb, _round_up(B, 8))          # never exceed the (8-rounded) batch
    grid = (pl.cdiv(B, tb),)               # ragged last block is masked by Pallas

    cost = pl.CostEstimate(
        flops=2 * B * (d_in * d_hid + d_hid * _D_OUT_PAD),
        transcendentals=0,
        bytes_accessed=(x.size * x.dtype.itemsize          # f32 activations
                        + w1_bf.size * 2 + b1_2d.size * 4
                        + w2_pad.size * 2 + b2_pad.size * 4
                        + B * _D_OUT_PAD * 4),              # narrow f32 output
    )

    out = pl.pallas_call(
        _mlp_kernel,
        out_shape=jax.ShapeDtypeStruct((B, _D_OUT_PAD), jnp.float32),
        grid=grid,
        in_specs=[
            # activations: one (tb, d_in) tile per grid step (auto double-buffered)
            pl.BlockSpec((tb, d_in), lambda i: (i, 0)),
            # weights / biases: same block every step -> stay resident in VMEM
            pl.BlockSpec((d_in, d_hid), lambda i: (0, 0)),
            pl.BlockSpec((1, d_hid), lambda i: (0, 0)),
            pl.BlockSpec((d_hid, _D_OUT_PAD), lambda i: (0, 0)),
            pl.BlockSpec((1, _D_OUT_PAD), lambda i: (0, 0)),
        ],
        out_specs=pl.BlockSpec((tb, _D_OUT_PAD), lambda i: (i, 0)),
        compiler_params=pltpu.CompilerParams(
            dimension_semantics=("parallel",)),
        cost_estimate=cost,
    )(x, w1_bf, b1_2d, w2_pad, b2_pad)

    # Only a tiny column slice remains (8 -> d_out lanes); no row slicing needed.
    return out[:, :d_out]


def server_cnn_forward(x, params, packed=None, batch_threshold=1024):
    """Convenience dispatcher. params = (w1, b1, w2, b2) f32.
    For small batches the fixed pallas_call overhead dominates, so plain XLA is
    used; large batches go through the fused Pallas kernel (pass `packed` from
    prepack_params to avoid re-packing weights every call)."""
    w1, b1, w2, b2 = params
    if x.shape[0] < batch_threshold:
        return jnp.maximum(x @ w1 + b1, 0.0) @ w2 + b2
    if packed is None:
        packed = prepack_params(w1, b1, w2, b2)
    w1_bf, b1_2d, w2_pad, b2_pad, d_out = packed
    return server_cnn_forward_pallas(x, w1_bf, b1_2d, w2_pad, b2_pad, d_out=d_out)


def init_params(key, n_frequencies):
    """Deterministic init mimicking PyTorch nn.Linear default
    (U[-1/sqrt(fan_in), 1/sqrt(fan_in)]). Weights stored pre-transposed [in, out]."""
    d_in = n_frequencies * 16
    k1, k2, k3, k4 = jax.random.split(key, 4)
    bound1 = 1.0 / jnp.sqrt(d_in)
    w1 = jax.random.uniform(k1, (d_in, 128), jnp.float32, -bound1, bound1)
    b1 = jax.random.uniform(k2, (128,), jnp.float32, -bound1, bound1)
    bound2 = 1.0 / jnp.sqrt(128.0)
    w2 = jax.random.uniform(k3, (128, 2), jnp.float32, -bound2, bound2)
    b2 = jax.random.uniform(k4, (2,), jnp.float32, -bound2, bound2)
    return w1, b1, w2, b2


if __name__ == "__main__":
    key = jax.random.PRNGKey(0)
    n_frequencies = 8            # -> fc1 input dim = 8 * 16 = 128
    k_params, k_x1, k_x2 = jax.random.split(key, 3)
    w1, b1, w2, b2 = init_params(k_params, n_frequencies)
    packed = prepack_params(w1, b1, w2, b2)          # one-time weight packing
    w1_bf, b1_2d, w2_pad, b2_pad, d_out = packed

    def ref_fn(x):
        # Pure-JAX f32 reference (eval-mode dropout = identity).
        return jnp.maximum(x @ w1 + b1, 0.0) @ w2 + b2

    # 1) Exercise the Pallas kernel on a tile-divisible batch.
    batch = 512
    x = jax.random.normal(k_x1, (batch, n_frequencies * 16), jnp.float32)
    out = server_cnn_forward_pallas(x, w1_bf, b1_2d, w2_pad, b2_pad, d_out=d_out)
    out = jax.block_until_ready(out)
    ref = ref_fn(x)
    assert out.shape == (batch, 2)
    assert jnp.allclose(out, ref, atol=5e-2, rtol=5e-2), (
        float(jnp.max(jnp.abs(out - ref))))

    # 2) Exercise the ragged-last-block path (no jnp.pad; boundary rows masked).
    batch2 = 200
    x2 = jax.random.normal(k_x2, (batch2, n_frequencies * 16), jnp.float32)
    out2 = server_cnn_forward_pallas(x2, w1_bf, b1_2d, w2_pad, b2_pad,
                                     d_out=d_out, tb=128)
    out2 = jax.block_until_ready(out2)
    ref2 = ref_fn(x2)
    assert out2.shape == (batch2, 2)
    assert jnp.allclose(out2, ref2, atol=5e-2, rtol=5e-2), (
        float(jnp.max(jnp.abs(out2 - ref2))))

    print("KERNEL_OK")
</pallas_src>

<mosaic_0001>
module attributes {stable_mosaic.version = 11 : i64} {
  func.func @_mlp_kernel(%arg0: i32, %arg1: memref<256x128xf32, #tpu.memory_space<vmem>>, %arg2: memref<128x128xbf16, #tpu.memory_space<vmem>>, %arg3: memref<1x128xf32, #tpu.memory_space<vmem>>, %arg4: memref<128x8xbf16, #tpu.memory_space<vmem>>, %arg5: memref<1x8xf32, #tpu.memory_space<vmem>>, %arg6: memref<256x8xf32, #tpu.memory_space<vmem>>) attributes {dimension_semantics = [#tpu.dimension_semantics<parallel>], iteration_bounds = array<i64: 2>, scalar_prefetch = 0 : i64, scratch_operands = 0 : i64, tpu.core_type = #tpu.core_type<tc>, window_params = [{transform_indices = @transform_0, window_bounds = array<i64: 256, 128>}, {pipeline_mode = #tpu.pipeline_mode<synchronous>, transform_indices = @transform_1, window_bounds = array<i64: 128, 128>}, {pipeline_mode = #tpu.pipeline_mode<synchronous>, transform_indices = @transform_2, window_bounds = array<i64: 1, 128>}, {pipeline_mode = #tpu.pipeline_mode<synchronous>, transform_indices = @transform_3, window_bounds = array<i64: 128, 8>}, {pipeline_mode = #tpu.pipeline_mode<synchronous>, transform_indices = @transform_4, window_bounds = array<i64: 1, 8>}, {transform_indices = @transform_5, window_bounds = array<i64: 256, 8>}]} {
    %c0 = arith.constant 0 : index
    %c0_0 = arith.constant 0 : index
    %0 = vector.load %arg1[%c0, %c0_0] : memref<256x128xf32, #tpu.memory_space<vmem>>, vector<256x128xf32>
    %1 = arith.truncf %0 : vector<256x128xf32> to vector<256x128xbf16>
    %c0_1 = arith.constant 0 : index
    %c0_2 = arith.constant 0 : index
    %2 = vector.load %arg2[%c0_1, %c0_2] : memref<128x128xbf16, #tpu.memory_space<vmem>>, vector<128x128xbf16>
    %cst = arith.constant dense<0.000000e+00> : vector<256x128xf32>
    %3 = tpu.matmul %1, %2, %cst {dimension_numbers = #tpu.dot_dimension_numbers<[1], [0], [0], [1], [0, 0, 1, 1], [], []>} : vector<256x128xbf16>, vector<128x128xbf16>, vector<256x128xf32> -> vector<256x128xf32>
    %c0_3 = arith.constant 0 : index
    %c0_4 = arith.constant 0 : index
    %4 = vector.load %arg3[%c0_3, %c0_4] : memref<1x128xf32, #tpu.memory_space<vmem>>, vector<1x128xf32>
    %5 = vector.broadcast %4 : vector<1x128xf32> to vector<256x128xf32>
    %6 = arith.addf %3, %5 : vector<256x128xf32>
    %cst_5 = arith.constant 0.000000e+00 : f32
    %7 = vector.broadcast %cst_5 : f32 to vector<256x128xf32>
    %8 = arith.maximumf %6, %7 : vector<256x128xf32>
    %9 = arith.truncf %8 : vector<256x128xf32> to vector<256x128xbf16>
    %c0_6 = arith.constant 0 : index
    %c0_7 = arith.constant 0 : index
    %10 = vector.load %arg4[%c0_6, %c0_7] : memref<128x8xbf16, #tpu.memory_space<vmem>>, vector<128x8xbf16>
    %cst_8 = arith.constant dense<0.000000e+00> : vector<256x8xf32>
    %11 = tpu.matmul %9, %10, %cst_8 {dimension_numbers = #tpu.dot_dimension_numbers<[1], [0], [0], [1], [0, 0, 1, 1], [], []>} : vector<256x128xbf16>, vector<128x8xbf16>, vector<256x8xf32> -> vector<256x8xf32>
    %c0_9 = arith.constant 0 : index
    %c0_10 = arith.constant 0 : index
    %12 = vector.load %arg5[%c0_9, %c0_10] : memref<1x8xf32, #tpu.memory_space<vmem>>, vector<1x8xf32>
    %13 = vector.broadcast %12 : vector<1x8xf32> to vector<256x8xf32>
    %14 = arith.addf %11, %13 : vector<256x8xf32>
    %c0_11 = arith.constant 0 : index
    %c0_12 = arith.constant 0 : index
    %15 = vector.load %arg6[%c0_11, %c0_12] : memref<256x8xf32, #tpu.memory_space<vmem>>, vector<256x8xf32>
    tpu.vector_store %arg6[%c0_11, %c0_12], %14 {strides = array<i32>} : memref<256x8xf32, #tpu.memory_space<vmem>>, vector<256x8xf32>,
    return
  }
  func.func @transform_0(%arg0: i32) -> (i32, i32) {
    %c0_i32 = arith.constant 0 : i32
    %c0_i32_0 = arith.constant 0 : i32
    return %arg0, %c0_i32 : i32, i32
  }
  func.func @transform_1(%arg0: i32) -> (i32, i32) {
    %c0_i32 = arith.constant 0 : i32
    %c0_i32_0 = arith.constant 0 : i32
    %c0_i32_1 = arith.constant 0 : i32
    return %c0_i32, %c0_i32_0 : i32, i32
  }
  func.func @transform_2(%arg0: i32) -> (i32, i32) {
    %c0_i32 = arith.constant 0 : i32
    %c0_i32_0 = arith.constant 0 : i32
    %c0_i32_1 = arith.constant 0 : i32
    return %c0_i32, %c0_i32_0 : i32, i32
  }
  func.func @transform_3(%arg0: i32) -> (i32, i32) {
    %c0_i32 = arith.constant 0 : i32
    %c0_i32_0 = arith.constant 0 : i32
    %c0_i32_1 = arith.constant 0 : i32
    return %c0_i32, %c0_i32_0 : i32, i32
  }
  func.func @transform_4(%arg0: i32) -> (i32, i32) {
    %c0_i32 = arith.constant 0 : i32
    %c0_i32_0 = arith.constant 0 : i32
    %c0_i32_1 = arith.constant 0 : i32
    return %c0_i32, %c0_i32_0 : i32, i32
  }
  func.func @transform_5(%arg0: i32) -> (i32, i32) {
    %c0_i32 = arith.constant 0 : i32
    %c0_i32_0 = arith.constant 0 : i32
    return %arg0, %c0_i32 : i32, i32
  }
}

</mosaic_0001>

<llo_original>
// kernel: server_cnn_forward_pallas.1
$region0: #{server_cnn_forward_pallas.1}
  #allocation0 [shape = 'u32[]', space=smem, size = 0x4, offset = 0x4, fixed_abs, tag = 'smem constant byte address 0x4 - core index']
  #allocation1 [shape = 'u32[144,128]{1,0:T(1,128)}', space=vmem, size = 0x12000, scoped, tag = 'internal scratch']
  %s0 = inlined_call_operand.hbm [shape: f32[512,128], index: 0, kind: input, shape index: {}]
  %s1 = inlined_call_operand.vmem [shape: bf16[128,128], index: 1, kind: input, shape index: {}]
  %s2 = inlined_call_operand.vmem [shape: f32[1,128], index: 2, kind: input, shape index: {}]
  %s3 = inlined_call_operand.vmem [shape: bf16[128,8], index: 3, kind: input, shape index: {}]
  %s4 = inlined_call_operand.vmem [shape: f32[1,8], index: 4, kind: input, shape index: {}]
  %s5 = inlined_call_operand.vmem [shape: f32[512,8], index: 5, kind: output, shape index: {}]
  %s6 = sld [smem:[#allocation0]]
  $region57: #{server_cnn_forward_pallas.1} parent=0
    _
  %s8 = ssub.s32 1, %s6
  %s9 = scalar_select 0, %s8, %s6
  $region1: #{server_cnn_forward_pallas.1} parent=0
    #allocation2 [shape = 'u8[262144]{0}', space=vmem, size = 0x40000, scoped, tag = 'input window, operand 0']
    #allocation3 [shape = 's32[2]{0}', space=sflag, size = 0x8, scoped, tag = 'scoped memory for server_cnn_forward_pallas.1']
    %10 = vsyncpa [#allocation3], 0
    %s11 = scalar_lea.sflag [#allocation3], 1
    %12 = vsyncpa %s11, 0
    loop: start=0, step=1, limit=4
    $region2: #{server_cnn_forward_pallas.1} parent=1 // loop_pre_header
      _
    $region3: #{server_cnn_forward_pallas.1} parent=1 // loop_header
      %s14 = sphi 0, %s18
      %p15 = scmp.ge.s32.totalorder %s14, 4
      %s24 = sphi 0, %s26
      %s27 = sphi 0, %s24
      %s28 = sphi 0, %s27
      %s44 = sphi 0, %s28
      %s48 = sphi 0, %s48
      %s50 = sphi 0, %s48
      %s51 = sphi 0, %s50
      %s65 = sphi 0, %s51
      %s69 = sphi 0, %s69
      %s71 = sphi 0, %s69
      %s72 = sphi 0, %s71
      %s86 = sphi 0, %s72
      %s90 = sphi 0, %s90
      %s92 = sphi 0, %s90
      %s93 = sphi 0, %s92
      %s107 = sphi 0, %s93
      %s111 = sphi 0, %s111
      %s113 = sphi 0, %s111
      %s114 = sphi 0, %s113
      %s128 = sphi 0, %s114
      %s134 = sphi 0, %s136
      %s137 = sphi 0, %s134
      %s138 = sphi 0, %s137
      %s154 = sphi 0, %s138
    $region4: #{server_cnn_forward_pallas.1} parent=1 // loop_header_branch
      %17 = sbr.rel (%p15) target = $region8
    $region5: #{server_cnn_forward_pallas.1} parent=1 // loop_body
      %s19 = ssub.s32 %s14, 1
      %s20 = ssub.s32 %s14, 2
      %s21 = sadd.s32 %s14, 1
      %s22 = ssub.s32 %s14, %s21
      %p23 = scmp.eq.s32.totalorder %s22, 0
      %s25 = sadd.s32 %s24, 1
      %s26 = scalar_select %p23, %s24, %s25
      %p29 = pneg %p23
      %p30 = scmp.eq.s32.totalorder %s14, 1
      %p31 = por %p29, %p30
      %p32 = scmp.ne.s32.totalorder %s24, %s27
      %p33 = scmp.eq.s32.totalorder %s14, 0
      %p34 = por %p32, %p33
      %p35 = scmp.ne.s32.totalorder %s24, %s27
      %p36 = scmp.eq.s32.totalorder %s19, 1
      %p37 = por %p35, %p36
      %p38 = scmp.ne.s32.totalorder %s27, %s28
      %p39 = scmp.eq.s32.totalorder %s19, 0
      %p40 = por %p38, %p39
      %p41 = scmp.ne.s32.totalorder %s27, %s28
      %p42 = scmp.eq.s32.totalorder %s20, 1
      %p43 = por %p41, %p42
      %p45 = scmp.ne.s32.totalorder %s28, %s44
      %p46 = scmp.eq.s32.totalorder %s20, 0
      %p47 = por %p45, %p46
      %s49 = sadd.s32 %s48, 1
      %p52 = scmp.eq.s32.totalorder %s14, 1
      %p53 = scmp.ne.s32.totalorder %s48, %s50
      %p54 = scmp.eq.s32.totalorder %s14, 0
      %p55 = por %p53, %p54
      %p56 = scmp.ne.s32.totalorder %s48, %s50
      %p57 = scmp.eq.s32.totalorder %s19, 1
      %p58 = por %p56, %p57
      %p59 = scmp.ne.s32.totalorder %s50, %s51
      %p60 = scmp.eq.s32.totalorder %s19, 0
      %p61 = por %p59, %p60
      %p62 = scmp.ne.s32.totalorder %s50, %s51
      %p63 = scmp.eq.s32.totalorder %s20, 1
      %p64 = por %p62, %p63
      %p66 = scmp.ne.s32.totalorder %s51, %s65
      %p67 = scmp.eq.s32.totalorder %s20, 0
      %p68 = por %p66, %p67
      %s70 = sadd.s32 %s69, 1
      %p73 = scmp.eq.s32.totalorder %s14, 1
      %p74 = scmp.ne.s32.totalorder %s69, %s71
      %p75 = scmp.eq.s32.totalorder %s14, 0
      %p76 = por %p74, %p75
      %p77 = scmp.ne.s32.totalorder %s69, %s71
      %p78 = scmp.eq.s32.totalorder %s19, 1
      %p79 = por %p77, %p78
      %p80 = scmp.ne.s32.totalorder %s71, %s72
      %p81 = scmp.eq.s32.totalorder %s19, 0
      %p82 = por %p80, %p81
      %p83 = scmp.ne.s32.totalorder %s71, %s72
      %p84 = scmp.eq.s32.totalorder %s20, 1
      %p85 = por %p83, %p84
      %p87 = scmp.ne.s32.totalorder %s72, %s86
      %p88 = scmp.eq.s32.totalorder %s20, 0
      %p89 = por %p87, %p88
      %s91 = sadd.s32 %s90, 1
      %p94 = scmp.eq.s32.totalorder %s14, 1
      %p95 = scmp.ne.s32.totalorder %s90, %s92
      %p96 = scmp.eq.s32.totalorder %s14, 0
      %p97 = por %p95, %p96
      %p98 = scmp.ne.s32.totalorder %s90, %s92
      %p99 = scmp.eq.s32.totalorder %s19, 1
      %p100 = por %p98, %p99
      %p101 = scmp.ne.s32.totalorder %s92, %s93
      %p102 = scmp.eq.s32.totalorder %s19, 0
      %p103 = por %p101, %p102
      %p104 = scmp.ne.s32.totalorder %s92, %s93
      %p105 = scmp.eq.s32.totalorder %s20, 1
      %p106 = por %p104, %p105
      %p108 = scmp.ne.s32.totalorder %s93, %s107
      %p109 = scmp.eq.s32.totalorder %s20, 0
      %p110 = por %p108, %p109
      %s112 = sadd.s32 %s111, 1
      %p115 = scmp.eq.s32.totalorder %s14, 1
      %p116 = scmp.ne.s32.totalorder %s111, %s113
      %p117 = scmp.eq.s32.totalorder %s14, 0
      %p118 = por %p116, %p117
      %p119 = scmp.ne.s32.totalorder %s111, %s113
      %p120 = scmp.eq.s32.totalorder %s19, 1
      %p121 = por %p119, %p120
      %p122 = scmp.ne.s32.totalorder %s113, %s114
      %p123 = scmp.eq.s32.totalorder %s19, 0
      %p124 = por %p122, %p123
      %p125 = scmp.ne.s32.totalorder %s113, %s114
      %p126 = scmp.eq.s32.totalorder %s20, 1
      %p127 = por %p125, %p126
      %p129 = scmp.ne.s32.totalorder %s114, %s128
      %p130 = scmp.eq.s32.totalorder %s20, 0
      %p131 = por %p129, %p130
      %s132 = ssub.s32 %s14, %s21
      %p133 = scmp.eq.s32.totalorder %s132, 0
      %s135 = sadd.s32 %s134, 1
      %s136 = scalar_select %p133, %s134, %s135
      %p139 = pneg %p133
      %p140 = scmp.eq.s32.totalorder %s14, 1
      %p141 = por %p139, %p140
      %p142 = scmp.ne.s32.totalorder %s134, %s137
      %p143 = scmp.eq.s32.totalorder %s14, 0
      %p144 = por %p142, %p143
      %p145 = scmp.ne.s32.totalorder %s134, %s137
      %p146 = scmp.eq.s32.totalorder %s19, 1
      %p147 = por %p145, %p146
      %p148 = scmp.ne.s32.totalorder %s137, %s138
      %p149 = scmp.eq.s32.totalorder %s19, 0
      %p150 = por %p148, %p149
      %p151 = scmp.ne.s32.totalorder %s137, %s138
      %p152 = scmp.eq.s32.totalorder %s20, 1
      %p153 = por %p151, %p152
      %p155 = scmp.ne.s32.totalorder %s138, %s154
      %p156 = scmp.eq.s32.totalorder %s20, 0
      %p157 = por %p155, %p156
      %p158 = scmp.le.s32.totalorder 1, %s14
      %p159 = scmp.lt.s32.totalorder %s14, 3
      %p160 = pnand %p158, %p159
      %p161 = pneg %p160
      // Predicated region
      $region9: #{server_cnn_forward_pallas.1} parent=5 // pred_check
        _
      $region10: #{server_cnn_forward_pallas.1} parent=5 // pred_check_branch
        %163 = sbr.rel (%p160) target = $region12
      $region11: #{server_cnn_forward_pallas.1} parent=5 // pred_region
        %s164 = ssub.s32 %s14, 1
        // Predicated region
        $region13: #{server_cnn_forward_pallas.1} parent=11 // pred_check
          %p165 = pneg %p61
        $region14: #{server_cnn_forward_pallas.1} parent=11 // pred_check_branch
          %167 = sbr.rel (%p165) target = $region16
        $region15: #{server_cnn_forward_pallas.1} parent=11 // pred_region
          _
        $region16: #{server_cnn_forward_pallas.1} parent=11 // pred_fallthru
          _
        // Predicated region
        $region17: #{server_cnn_forward_pallas.1} parent=11 // pred_check
          %p168 = pneg %p82
        $region18: #{server_cnn_forward_pallas.1} parent=11 // pred_check_branch
          %170 = sbr.rel (%p168) target = $region20
        $region19: #{server_cnn_forward_pallas.1} parent=11 // pred_region
          _
        $region20: #{server_cnn_forward_pallas.1} parent=11 // pred_fallthru
          _
        // Predicated region
        $region21: #{server_cnn_forward_pallas.1} parent=11 // pred_check
          %p171 = pneg %p103
        $region22: #{server_cnn_forward_pallas.1} parent=11 // pred_check_branch
          %173 = sbr.rel (%p171) target = $region24
        $region23: #{server_cnn_forward_pallas.1} parent=11 // pred_region
          _
        $region24: #{server_cnn_forward_pallas.1} parent=11 // pred_fallthru
          _
        // Predicated region
        $region25: #{server_cnn_forward_pallas.1} parent=11 // pred_check
          %p174 = pneg %p124
        $region26: #{server_cnn_forward_pallas.1} parent=11 // pred_check_branch
          %176 = sbr.rel (%p174) target = $region28
        $region27: #{server_cnn_forward_pallas.1} parent=11 // pred_region
          _
        $region28: #{server_cnn_forward_pallas.1} parent=11 // pred_fallthru
          _
      $region12: #{server_cnn_forward_pallas.1} parent=5 // pred_fallthru
        _
      %p177 = scmp.lt.s32.totalorder %s14, 2
      // Predicated region
      $region29: #{server_cnn_forward_pallas.1} parent=5 // pred_check
        %p178 = pneg %p177
      $region30: #{server_cnn_forward_pallas.1} parent=5 // pred_check_branch
        %180 = sbr.rel (%p178) target = $region32
      $region31: #{server_cnn_forward_pallas.1} parent=5 // pred_region
        // Predicated region
        $region33: #{server_cnn_forward_pallas.1} parent=31 // pred_check
          %p181 = pneg %p34
        $region34: #{server_cnn_forward_pallas.1} parent=31 // pred_check_branch
          %183 = sbr.rel (%p181) target = $region36
        $region35: #{server_cnn_forward_pallas.1} parent=31 // pred_region
          %s184 = sand.u32 %s24, 1
          %s185 = scalar_lea.sflag [#allocation3], %s184
          %s186 = sand.u32 %s24, 1
          %s187 = smul.addr %s186, 256
          %s188 = scalar_lea.vmem [#allocation2], %s187
          %s189 = smul.u32 32, %s14
          %s191 = ssub.s32 4096, 4096
          %192 = vsyncadd %s185, %s191
          %s193 = smul.addr %s189, 128
          %s194 = scalar_lea.hbm %s0, %s193
          %s195 = sshll.u32 %s188, 4
          %s196 = int_to_ptr.vmem [resolvable:$true] %s195
          %201 = dma.hbm_to_vmem [thread:$0]  %s194, 4096, %s196, %s185, 128, 128, 8
        $region36: #{server_cnn_forward_pallas.1} parent=31 // pred_fallthru
          _
      $region32: #{server_cnn_forward_pallas.1} parent=5 // pred_fallthru
        _
      %p202 = scmp.le.s32.totalorder 1, %s14
      %p203 = scmp.lt.s32.totalorder %s14, 3
      %p204 = pnand %p202, %p203
      %p205 = pneg %p204
      // Predicated region
      $region37: #{server_cnn_forward_pallas.1} parent=5 // pred_check
        _
      $region38: #{server_cnn_forward_pallas.1} parent=5 // pred_check_branch
        %207 = sbr.rel (%p204) target = $region40
      $region39: #{server_cnn_forward_pallas.1} parent=5 // pred_region
        %s208 = ssub.s32 %s14, 1
        %s209 = sand.u32 %s27, 1
        %s210 = scalar_lea.sflag [#allocation3], %s209
        %s211 = sand.u32 %s27, 1
        %s212 = smul.addr %s211, 256
        %s213 = scalar_lea.vmem [#allocation2], %s212
        // Predicated region
        $region41: #{server_cnn_forward_pallas.1} parent=39 // pred_check
          %p214 = pneg %p40
        $region42: #{server_cnn_forward_pallas.1} parent=39 // pred_check_branch
          %216 = sbr.rel (%p214) target = $region44
        $region43: #{server_cnn_forward_pallas.1} parent=39 // pred_region
          %217 = dma.done %s210, 4096
        $region44: #{server_cnn_forward_pallas.1} parent=39 // pred_fallthru
          _
        %s218 = sand.u32 %s27, 1
        %s219 = scalar_lea.sflag [#allocation3], %s218
        %s220 = sand.u32 %s27, 1
        %s221 = smul.addr %s220, 256
        %s222 = scalar_lea.vmem [#allocation2], %s221
        %p223 = pneg %p40
        %p224 = pneg %p37
        %p225 = pneg %p61
        %p226 = pneg %p58
        %p227 = pneg %p82
        %p228 = pneg %p79
        %p229 = pneg %p103
        %p230 = pneg %p100
        %p231 = pneg %p124
        %p232 = pneg %p121
        %p233 = pneg %p150
        %p234 = pneg %p147
        %s235 = smul.u32 32, %s19
        %p236 = scmp.lt.s32.totalorder %s235, 63
        %s237 = scalar_select %p236, %s235, 63
        %s238 = smul.addr %s237, 8
        %s239 = scalar_lea.vmem %s5, %s238
        %s240 = smul.u32 32, %s19
        %s241 = smul.u32 32, %s19
        %p242 = scmp.lt.s32.totalorder %s241, 63
        %s243 = scalar_select %p242, %s241, 63
        %s244 = smul.addr %s243, 8
        %s245 = scalar_lea.vmem %s5, %s244
        %s246 = smul.u32 32, %s19
        %v248 = vld [vmem:[%s213] sm:$0xff]
        %v249 = vld [vmem:[%s213 + $0x8] sm:$0xff]
        %v250 = vld [vmem:[%s213 + $0x10] sm:$0xff]
        %v251 = vld [vmem:[%s213 + $0x18] sm:$0xff]
        %v252 = vld [vmem:[%s213 + $0x20] sm:$0xff]
        %v253 = vld [vmem:[%s213 + $0x28] sm:$0xff]
        %v254 = vld [vmem:[%s213 + $0x30] sm:$0xff]
        %v255 = vld [vmem:[%s213 + $0x38] sm:$0xff]
        %v256 = vld [vmem:[%s213 + $0x40] sm:$0xff]
        %v257 = vld [vmem:[%s213 + $0x48] sm:$0xff]
        %v258 = vld [vmem:[%s213 + $0x50] sm:$0xff]
        %v259 = vld [vmem:[%s213 + $0x58] sm:$0xff]
        %v260 = vld [vmem:[%s213 + $0x60] sm:$0xff]
        %v261 = vld [vmem:[%s213 + $0x68] sm:$0xff]
        %v262 = vld [vmem:[%s213 + $0x70] sm:$0xff]
        %v263 = vld [vmem:[%s213 + $0x78] sm:$0xff]
        %v264 = vld [vmem:[%s213 + $0x80] sm:$0xff]
        %v265 = vld [vmem:[%s213 + $0x88] sm:$0xff]
        %v266 = vld [vmem:[%s213 + $0x90] sm:$0xff]
        %v267 = vld [vmem:[%s213 + $0x98] sm:$0xff]
        %v268 = vld [vmem:[%s213 + $0xa0] sm:$0xff]
        %v269 = vld [vmem:[%s213 + $0xa8] sm:$0xff]
        %v270 = vld [vmem:[%s213 + $0xb0] sm:$0xff]
        %v271 = vld [vmem:[%s213 + $0xb8] sm:$0xff]
        %v272 = vld [vmem:[%s213 + $0xc0] sm:$0xff]
        %v273 = vld [vmem:[%s213 + $0xc8] sm:$0xff]
        %v274 = vld [vmem:[%s213 + $0xd0] sm:$0xff]
        %v275 = vld [vmem:[%s213 + $0xd8] sm:$0xff]
        %v276 = vld [vmem:[%s213 + $0xe0] sm:$0xff]
        %v277 = vld [vmem:[%s213 + $0xe8] sm:$0xff]
        %v278 = vld [vmem:[%s213 + $0xf0] sm:$0xff]
        %v279 = vld [vmem:[%s213 + $0xf8] sm:$0xff]
        %v280 = vpack.c.bf16 %v249, %v248
        %v281 = vpack.c.bf16 %v251, %v250
        %v282 = vpack.c.bf16 %v253, %v252
        %v283 = vpack.c.bf16 %v255, %v254
        %v284 = vpack.c.bf16 %v257, %v256
        %v285 = vpack.c.bf16 %v259, %v258
        %v286 = vpack.c.bf16 %v261, %v260
        %v287 = vpack.c.bf16 %v263, %v262
        %v288 = vpack.c.bf16 %v265, %v264
        %v289 = vpack.c.bf16 %v267, %v266
        %v290 = vpack.c.bf16 %v269, %v268
        %v291 = vpack.c.bf16 %v271, %v270
        %v292 = vpack.c.bf16 %v273, %v272
        %v293 = vpack.c.bf16 %v275, %v274
        %v294 = vpack.c.bf16 %v277, %v276
        %v295 = vpack.c.bf16 %v279, %v278
        %v296 = vld [vmem:[%s1] sm:$0xf]
        %v297 = vld [vmem:[%s1 + $0x4] sm:$0xf]
        %v298 = vld [vmem:[%s1 + $0x8] sm:$0xf]
        %v299 = vld [vmem:[%s1 + $0xc] sm:$0xf]
        %v300 = vld [vmem:[%s1 + $0x10] sm:$0xf]
        %v301 = vld [vmem:[%s1 + $0x14] sm:$0xf]
        %v302 = vld [vmem:[%s1 + $0x18] sm:$0xf]
        %v303 = vld [vmem:[%s1 + $0x1c] sm:$0xf]
        %v304 = vld [vmem:[%s1 + $0x20] sm:$0xf]
        %v305 = vld [vmem:[%s1 + $0x24] sm:$0xf]
        %v306 = vld [vmem:[%s1 + $0x28] sm:$0xf]
        %v307 = vld [vmem:[%s1 + $0x2c] sm:$0xf]
        %v308 = vld [vmem:[%s1 + $0x30] sm:$0xf]
        %v309 = vld [vmem:[%s1 + $0x34] sm:$0xf]
        %v310 = vld [vmem:[%s1 + $0x38] sm:$0xf]
        %v311 = vld [vmem:[%s1 + $0x3c] sm:$0xf]
        %v312 = vld [vmem:[%s2] sm:$0x1]
        %v314 = vlaneseq
        %v315 = vshrl.u32 %v314, 7
        %v316 = vsub.s32 0, %v315
        %v317 = vrot.slane %v312, %v316
        %v335 = vunpack.c.l.b16 %v296
        %v336 = vunpack.c.l.b16 %v297
        %v337 = vunpack.c.l.b16 %v298
        %v338 = vunpack.c.l.b16 %v299
        %v339 = vunpack.c.l.b16 %v300
        %v340 = vunpack.c.l.b16 %v301
        %v341 = vunpack.c.l.b16 %v302
        %v342 = vunpack.c.l.b16 %v303
        %v343 = vunpack.c.l.b16 %v304
        %v344 = vunpack.c.l.b16 %v305
        %v345 = vunpack.c.l.b16 %v306
        %v346 = vunpack.c.l.b16 %v307
        %v347 = vunpack.c.l.b16 %v308
        %v348 = vunpack.c.l.b16 %v309
        %v349 = vunpack.c.l.b16 %v310
        %v350 = vunpack.c.l.b16 %v311
        %v351 = vpack.c.b16 %v336, %v335
        %v352 = vpack.c.b16 %v338, %v337
        %v353 = vpack.c.b16 %v340, %v339
        %v354 = vpack.c.b16 %v342, %v341
        %v355 = vpack.c.b16 %v344, %v343
        %v356 = vpack.c.b16 %v346, %v345
        %v357 = vpack.c.b16 %v348, %v347
        %v358 = vpack.c.b16 %v350, %v349
        %367 = vmatprep.subr.bf16.mxu0 0
        %368 = vmatpush1.bf16.msra.mxu0 %v358
        %369 = vmatprep.subr.bf16.mxu0 0
        %370 = vmatpush1.bf16.msra.mxu0 %v357
        %371 = vmatprep.subr.bf16.mxu0 0
        %372 = vmatpush1.bf16.msra.mxu0 %v356
        %373 = vmatprep.subr.bf16.mxu0 0
        %374 = vmatpush1.bf16.msra.mxu0 %v355
        %375 = vmatprep.subr.bf16.mxu0 0
        %376 = vmatpush1.bf16.msra.mxu0 %v354
        %377 = vmatprep.subr.bf16.mxu0 0
        %378 = vmatpush1.bf16.msra.mxu0 %v353
        %379 = vmatprep.subr.bf16.mxu0 0
        %380 = vmatpush1.bf16.msra.mxu0 %v352
        %381 = vmatprep.subr.bf16.mxu0 0
        %382 = vmatpush1.bf16.msra.mxu0 %v351
        %383 = vmatprep.subr.bf16.mxu0 0
        %384 = vmatpush2.bf16.msra.mxu0 0
        %385 = vmatprep.subr.bf16.mxu0 0
        %386 = vmatpush2.bf16.msra.mxu0 0
        %387 = vmatprep.subr.bf16.mxu0 0
        %388 = vmatpush2.bf16.msra.mxu0 0
        %389 = vmatprep.subr.bf16.mxu0 0
        %390 = vmatpush2.bf16.msra.mxu0 0
        %391 = vmatprep.subr.bf16.mxu0 0
        %392 = vmatpush2.bf16.msra.mxu0 0
        %393 = vmatprep.subr.bf16.mxu0 0
        %394 = vmatpush2.bf16.msra.mxu0 0
        %395 = vmatprep.subr.bf16.mxu0 0
        %396 = vmatpush2.bf16.msra.mxu0 0
        %397 = vmatprep.subr.bf16.mxu0 0
        %398 = vmatpush2.bf16.msra.mxu0 0
        %399 = vmatprep.mubr.bf16.mxu0 0
        %400 = vmatmul.mubr.bf16.gmra.mxu0 %v280
        %v401 = vpop.f32.mrf.mxu0
        %v402 = vadd.f32 %v317, %v401
        %v403 = vpop.f32.mrf.mxu0
        %v404 = vpop.f32.mrf.mxu0
        %v405 = vadd.f32 %v317, %v404
        %v406 = vpop.f32.mrf.mxu0
        %407 = vmatprep.mubr.bf16.mxu0 0
        %408 = vmatmul.mubr.bf16.gmra.mxu0 %v281
        %v409 = vpop.f32.mrf.mxu0
        %v410 = vadd.f32 %v317, %v409
        %v411 = vpop.f32.mrf.mxu0
        %v412 = vpop.f32.mrf.mxu0
        %v413 = vadd.f32 %v317, %v412
        %v414 = vpop.f32.mrf.mxu0
        %415 = vmatprep.mubr.bf16.mxu0 0
        %416 = vmatmul.mubr.bf16.gmra.mxu0 %v282
        %v417 = vpop.f32.mrf.mxu0
        %v418 = vadd.f32 %v317, %v417
        %v419 = vpop.f32.mrf.mxu0
        %v420 = vpop.f32.mrf.mxu0
        %v421 = vadd.f32 %v317, %v420
        %v422 = vpop.f32.mrf.mxu0
        %423 = vmatprep.mubr.bf16.mxu0 0
        %424 = vmatmul.mubr.bf16.gmra.mxu0 %v283
        %v425 = vpop.f32.mrf.mxu0
        %v426 = vadd.f32 %v317, %v425
        %v427 = vpop.f32.mrf.mxu0
        %v428 = vpop.f32.mrf.mxu0
        %v429 = vadd.f32 %v317, %v428
        %v430 = vpop.f32.mrf.mxu0
        %431 = vmatprep.mubr.bf16.mxu0 0
        %432 = vmatmul.mubr.bf16.gmra.mxu0 %v284
        %v433 = vpop.f32.mrf.mxu0
        %v434 = vadd.f32 %v317, %v433
        %v435 = vpop.f32.mrf.mxu0
        %v436 = vpop.f32.mrf.mxu0
        %v437 = vadd.f32 %v317, %v436
        %v438 = vpop.f32.mrf.mxu0
        %439 = vmatprep.mubr.bf16.mxu0 0
        %440 = vmatmul.mubr.bf16.gmra.mxu0 %v285
        %v441 = vpop.f32.mrf.mxu0
        %v442 = vadd.f32 %v317, %v441
        %v443 = vpop.f32.mrf.mxu0
        %v444 = vpop.f32.mrf.mxu0
        %v445 = vadd.f32 %v317, %v444
        %v446 = vpop.f32.mrf.mxu0
        %447 = vmatprep.mubr.bf16.mxu0 0
        %448 = vmatmul.mubr.bf16.gmra.mxu0 %v286
        %v449 = vpop.f32.mrf.mxu0
        %v450 = vadd.f32 %v317, %v449
        %v451 = vpop.f32.mrf.mxu0
        %v452 = vpop.f32.mrf.mxu0
        %v453 = vadd.f32 %v317, %v452
        %v454 = vpop.f32.mrf.mxu0
        %455 = vmatprep.mubr.bf16.mxu0 0
        %456 = vmatmul.mubr.bf16.gmra.mxu0 %v287
        %v457 = vpop.f32.mrf.mxu0
        %v458 = vadd.f32 %v317, %v457
        %v459 = vpop.f32.mrf.mxu0
        %v460 = vpop.f32.mrf.mxu0
        %v461 = vadd.f32 %v317, %v460
        %v462 = vpop.f32.mrf.mxu0
        %463 = vmatprep.mubr.bf16.mxu0 0
        %464 = vmatmul.mubr.bf16.gmra.mxu0 %v288
        %v465 = vpop.f32.mrf.mxu0
        %v466 = vadd.f32 %v317, %v465
        %v467 = vpop.f32.mrf.mxu0
        %v468 = vpop.f32.mrf.mxu0
        %v469 = vadd.f32 %v317, %v468
        %v470 = vpop.f32.mrf.mxu0
        %471 = vmatprep.mubr.bf16.mxu0 0
        %472 = vmatmul.mubr.bf16.gmra.mxu0 %v289
        %v473 = vpop.f32.mrf.mxu0
        %v474 = vadd.f32 %v317, %v473
        %v475 = vpop.f32.mrf.mxu0
        %v476 = vpop.f32.mrf.mxu0
        %v477 = vadd.f32 %v317, %v476
        %v478 = vpop.f32.mrf.mxu0
        %479 = vmatprep.mubr.bf16.mxu0 0
        %480 = vmatmul.mubr.bf16.gmra.mxu0 %v290
        %v481 = vpop.f32.mrf.mxu0
        %v482 = vadd.f32 %v317, %v481
        %v483 = vpop.f32.mrf.mxu0
        %v484 = vpop.f32.mrf.mxu0
        %v485 = vadd.f32 %v317, %v484
        %v486 = vpop.f32.mrf.mxu0
        %487 = vmatprep.mubr.bf16.mxu0 0
        %488 = vmatmul.mubr.bf16.gmra.mxu0 %v291
        %v489 = vpop.f32.mrf.mxu0
        %v490 = vadd.f32 %v317, %v489
        %v491 = vpop.f32.mrf.mxu0
        %v492 = vpop.f32.mrf.mxu0
        %v493 = vadd.f32 %v317, %v492
        %v494 = vpop.f32.mrf.mxu0
        %495 = vmatprep.mubr.bf16.mxu0 0
        %496 = vmatmul.mubr.bf16.gmra.mxu0 %v292
        %v497 = vpop.f32.mrf.mxu0
        %v498 = vadd.f32 %v317, %v497
        %v499 = vpop.f32.mrf.mxu0
        %v500 = vpop.f32.mrf.mxu0
        %v501 = vadd.f32 %v317, %v500
        %v502 = vpop.f32.mrf.mxu0
        %503 = vmatprep.mubr.bf16.mxu0 0
        %504 = vmatmul.mubr.bf16.gmra.mxu0 %v293
        %v505 = vpop.f32.mrf.mxu0
        %v506 = vadd.f32 %v317, %v505
        %v507 = vpop.f32.mrf.mxu0
        %v508 = vpop.f32.mrf.mxu0
        %v509 = vadd.f32 %v317, %v508
        %v510 = vpop.f32.mrf.mxu0
        %511 = vmatprep.mubr.bf16.mxu0 0
        %512 = vmatmul.mubr.bf16.gmra.mxu0 %v294
        %v513 = vpop.f32.mrf.mxu0
        %v514 = vadd.f32 %v317, %v513
        %v515 = vpop.f32.mrf.mxu0
        %v516 = vpop.f32.mrf.mxu0
        %v517 = vadd.f32 %v317, %v516
        %v518 = vpop.f32.mrf.mxu0
        %519 = vmatprep.mubr.bf16.mxu0 0
        %520 = vmatmul.mubr.bf16.gmra.mxu0 %v295
        %v521 = vpop.f32.mrf.mxu0
        %v522 = vadd.f32 %v317, %v521
        %v523 = vpop.f32.mrf.mxu0
        %v524 = vpop.f32.mrf.mxu0
        %v525 = vadd.f32 %v317, %v524
        %v526 = vpop.f32.mrf.mxu0
        %527 = vdwg.mxu0
        %v528 = vmax.f32 %v402, 0.0
        %v529 = vmax.f32 %v405, 0.0
        %v530 = vmax.f32 %v410, 0.0
        %v531 = vmax.f32 %v413, 0.0
        %v532 = vmax.f32 %v418, 0.0
        %v533 = vmax.f32 %v421, 0.0
        %v534 = vmax.f32 %v426, 0.0
        %v535 = vmax.f32 %v429, 0.0
        %v536 = vmax.f32 %v434, 0.0
        %v537 = vmax.f32 %v437, 0.0
        %v538 = vmax.f32 %v442, 0.0
        %v539 = vmax.f32 %v445, 0.0
        %v540 = vmax.f32 %v450, 0.0
        %v541 = vmax.f32 %v453, 0.0
        %v542 = vmax.f32 %v458, 0.0
        %v543 = vmax.f32 %v461, 0.0
        %v544 = vmax.f32 %v466, 0.0
        %v545 = vmax.f32 %v469, 0.0
        %v546 = vmax.f32 %v474, 0.0
        %v547 = vmax.f32 %v477, 0.0
        %v548 = vmax.f32 %v482, 0.0
        %v549 = vmax.f32 %v485, 0.0
        %v550 = vmax.f32 %v490, 0.0
        %v551 = vmax.f32 %v493, 0.0
        %v552 = vmax.f32 %v498, 0.0
        %v553 = vmax.f32 %v501, 0.0
        %v554 = vmax.f32 %v506, 0.0
        %v555 = vmax.f32 %v509, 0.0
        %v556 = vmax.f32 %v514, 0.0
        %v557 = vmax.f32 %v517, 0.0
        %v558 = vmax.f32 %v522, 0.0
        %v559 = vmax.f32 %v525, 0.0
        %v560 = vpack.c.bf16 %v529, %v528
        %v561 = vpack.c.bf16 %v531, %v530
        %v562 = vpack.c.bf16 %v533, %v532
        %v563 = vpack.c.bf16 %v535, %v534
        %v564 = vpack.c.bf16 %v537, %v536
        %v565 = vpack.c.bf16 %v539, %v538
        %v566 = vpack.c.bf16 %v541, %v540
        %v567 = vpack.c.bf16 %v543, %v542
        %v568 = vpack.c.bf16 %v545, %v544
        %v569 = vpack.c.bf16 %v547, %v546
        %v570 = vpack.c.bf16 %v549, %v548
        %v571 = vpack.c.bf16 %v551, %v550
        %v572 = vpack.c.bf16 %v553, %v552
        %v573 = vpack.c.bf16 %v555, %v554
        %v574 = vpack.c.bf16 %v557, %v556
        %v575 = vpack.c.bf16 %v559, %v558
        %v576 = vld [vmem:[%s3] sm:$0xf]
        %v577 = vld [vmem:[%s3 + $0x4] sm:$0xf]
        %v578 = vld [vmem:[%s3 + $0x8] sm:$0xf]
        %v579 = vld [vmem:[%s3 + $0xc] sm:$0xf]
        %v580 = vld [vmem:[%s3 + $0x10] sm:$0xf]
        %v581 = vld [vmem:[%s3 + $0x14] sm:$0xf]
        %v582 = vld [vmem:[%s3 + $0x18] sm:$0xf]
        %v583 = vld [vmem:[%s3 + $0x1c] sm:$0xf]
        %v584 = vld [vmem:[%s3 + $0x20] sm:$0xf]
        %v585 = vld [vmem:[%s3 + $0x24] sm:$0xf]
        %v586 = vld [vmem:[%s3 + $0x28] sm:$0xf]
        %v587 = vld [vmem:[%s3 + $0x2c] sm:$0xf]
        %v588 = vld [vmem:[%s3 + $0x30] sm:$0xf]
        %v589 = vld [vmem:[%s3 + $0x34] sm:$0xf]
        %v590 = vld [vmem:[%s3 + $0x38] sm:$0xf]
        %v591 = vld [vmem:[%s3 + $0x3c] sm:$0xf]
        %v592 = vld [vmem:[%s4] sm:$0x1]
        %v594 = vlaneseq
        %v595 = vshrl.u32 %v594, 7
        %v596 = vsub.s32 0, %v595
        %v597 = vrot.slane %v592, %v596
        %v615 = vunpack.c.l.b16 %v576
        %v616 = vunpack.c.l.b16 %v577
        %v617 = vunpack.c.l.b16 %v578
        %v618 = vunpack.c.l.b16 %v579
        %v619 = vunpack.c.l.b16 %v580
        %v620 = vunpack.c.l.b16 %v581
        %v621 = vunpack.c.l.b16 %v582
        %v622 = vunpack.c.l.b16 %v583
        %v623 = vunpack.c.l.b16 %v584
        %v624 = vunpack.c.l.b16 %v585
        %v625 = vunpack.c.l.b16 %v586
        %v626 = vunpack.c.l.b16 %v587
        %v627 = vunpack.c.l.b16 %v588
        %v628 = vunpack.c.l.b16 %v589
        %v629 = vunpack.c.l.b16 %v590
        %v630 = vunpack.c.l.b16 %v591
        %v631 = vpack.c.b16 %v616, %v615
        %v632 = vpack.c.b16 %v618, %v617
        %v633 = vpack.c.b16 %v620, %v619
        %v634 = vpack.c.b16 %v622, %v621
        %v635 = vpack.c.b16 %v624, %v623
        %v636 = vpack.c.b16 %v626, %v625
        %v637 = vpack.c.b16 %v628, %v627
        %v638 = vpack.c.b16 %v630, %v629
        %647 = vmatprep.subr.bf16.mxu0 0
        %648 = vmatpush1.bf16.msra.mxu0 %v638
        %649 = vmatprep.subr.bf16.mxu0 0
        %650 = vmatpush1.bf16.msra.mxu0 %v637
        %651 = vmatprep.subr.bf16.mxu0 0
        %652 = vmatpush1.bf16.msra.mxu0 %v636
        %653 = vmatprep.subr.bf16.mxu0 0
        %654 = vmatpush1.bf16.msra.mxu0 %v635
        %655 = vmatprep.subr.bf16.mxu0 0
        %656 = vmatpush1.bf16.msra.mxu0 %v634
        %657 = vmatprep.subr.bf16.mxu0 0
        %658 = vmatpush1.bf16.msra.mxu0 %v633
        %659 = vmatprep.subr.bf16.mxu0 0
        %660 = vmatpush1.bf16.msra.mxu0 %v632
        %661 = vmatprep.subr.bf16.mxu0 0
        %662 = vmatpush1.bf16.msra.mxu0 %v631
        %663 = vmatprep.subr.bf16.mxu0 0
        %664 = vmatpush2.bf16.msra.mxu0 0
        %665 = vmatprep.subr.bf16.mxu0 0
        %666 = vmatpush2.bf16.msra.mxu0 0
        %667 = vmatprep.subr.bf16.mxu0 0
        %668 = vmatpush2.bf16.msra.mxu0 0
        %669 = vmatprep.subr.bf16.mxu0 0
        %670 = vmatpush2.bf16.msra.mxu0 0
        %671 = vmatprep.subr.bf16.mxu0 0
        %672 = vmatpush2.bf16.msra.mxu0 0
        %673 = vmatprep.subr.bf16.mxu0 0
        %674 = vmatpush2.bf16.msra.mxu0 0
        %675 = vmatprep.subr.bf16.mxu0 0
        %676 = vmatpush2.bf16.msra.mxu0 0
        %677 = vmatprep.subr.bf16.mxu0 0
        %678 = vmatpush2.bf16.msra.mxu0 0
        %679 = vmatprep.mubr.bf16.mxu0 0
        %680 = vmatmul.mubr.bf16.gmra.mxu0 %v560
        %v681 = vpop.f32.mrf.mxu0
        %v682 = vadd.f32 %v597, %v681
        %v683 = vpop.f32.mrf.mxu0
        %v684 = vpop.f32.mrf.mxu0
        %v685 = vadd.f32 %v597, %v684
        %v686 = vpop.f32.mrf.mxu0
        %687 = vmatprep.mubr.bf16.mxu0 0
        %688 = vmatmul.mubr.bf16.gmra.mxu0 %v561
        %v689 = vpop.f32.mrf.mxu0
        %v690 = vadd.f32 %v597, %v689
        %v691 = vpop.f32.mrf.mxu0
        %v692 = vpop.f32.mrf.mxu0
        %v693 = vadd.f32 %v597, %v692
        %v694 = vpop.f32.mrf.mxu0
        %695 = vmatprep.mubr.bf16.mxu0 0
        %696 = vmatmul.mubr.bf16.gmra.mxu0 %v562
        %v697 = vpop.f32.mrf.mxu0
        %v698 = vadd.f32 %v597, %v697
        %v699 = vpop.f32.mrf.mxu0
        %v700 = vpop.f32.mrf.mxu0
        %v701 = vadd.f32 %v597, %v700
        %v702 = vpop.f32.mrf.mxu0
        %703 = vmatprep.mubr.bf16.mxu0 0
        %704 = vmatmul.mubr.bf16.gmra.mxu0 %v563
        %v705 = vpop.f32.mrf.mxu0
        %v706 = vadd.f32 %v597, %v705
        %v707 = vpop.f32.mrf.mxu0
        %v708 = vpop.f32.mrf.mxu0
        %v709 = vadd.f32 %v597, %v708
        %v710 = vpop.f32.mrf.mxu0
        %711 = vmatprep.mubr.bf16.mxu0 0
        %712 = vmatmul.mubr.bf16.gmra.mxu0 %v564
        %v713 = vpop.f32.mrf.mxu0
        %v714 = vadd.f32 %v597, %v713
        %v715 = vpop.f32.mrf.mxu0
        %v716 = vpop.f32.mrf.mxu0
        %v717 = vadd.f32 %v597, %v716
        %v718 = vpop.f32.mrf.mxu0
        %719 = vmatprep.mubr.bf16.mxu0 0
        %720 = vmatmul.mubr.bf16.gmra.mxu0 %v565
        %v721 = vpop.f32.mrf.mxu0
        %v722 = vadd.f32 %v597, %v721
        %v723 = vpop.f32.mrf.mxu0
        %v724 = vpop.f32.mrf.mxu0
        %v725 = vadd.f32 %v597, %v724
        %v726 = vpop.f32.mrf.mxu0
        %727 = vmatprep.mubr.bf16.mxu0 0
        %728 = vmatmul.mubr.bf16.gmra.mxu0 %v566
        %v729 = vpop.f32.mrf.mxu0
        %v730 = vadd.f32 %v597, %v729
        %v731 = vpop.f32.mrf.mxu0
        %v732 = vpop.f32.mrf.mxu0
        %v733 = vadd.f32 %v597, %v732
        %v734 = vpop.f32.mrf.mxu0
        %735 = vmatprep.mubr.bf16.mxu0 0
        %736 = vmatmul.mubr.bf16.gmra.mxu0 %v567
        %v737 = vpop.f32.mrf.mxu0
        %v738 = vadd.f32 %v597, %v737
        %v739 = vpop.f32.mrf.mxu0
        %v740 = vpop.f32.mrf.mxu0
        %v741 = vadd.f32 %v597, %v740
        %v742 = vpop.f32.mrf.mxu0
        %743 = vmatprep.mubr.bf16.mxu0 0
        %744 = vmatmul.mubr.bf16.gmra.mxu0 %v568
        %v745 = vpop.f32.mrf.mxu0
        %v746 = vadd.f32 %v597, %v745
        %v747 = vpop.f32.mrf.mxu0
        %v748 = vpop.f32.mrf.mxu0
        %v749 = vadd.f32 %v597, %v748
        %v750 = vpop.f32.mrf.mxu0
        %751 = vmatprep.mubr.bf16.mxu0 0
        %752 = vmatmul.mubr.bf16.gmra.mxu0 %v569
        %v753 = vpop.f32.mrf.mxu0
        %v754 = vadd.f32 %v597, %v753
        %v755 = vpop.f32.mrf.mxu0
        %v756 = vpop.f32.mrf.mxu0
        %v757 = vadd.f32 %v597, %v756
        %v758 = vpop.f32.mrf.mxu0
        %759 = vmatprep.mubr.bf16.mxu0 0
        %760 = vmatmul.mubr.bf16.gmra.mxu0 %v570
        %v761 = vpop.f32.mrf.mxu0
        %v762 = vadd.f32 %v597, %v761
        %v763 = vpop.f32.mrf.mxu0
        %v764 = vpop.f32.mrf.mxu0
        %v765 = vadd.f32 %v597, %v764
        %v766 = vpop.f32.mrf.mxu0
        %767 = vmatprep.mubr.bf16.mxu0 0
        %768 = vmatmul.mubr.bf16.gmra.mxu0 %v571
        %v769 = vpop.f32.mrf.mxu0
        %v770 = vadd.f32 %v597, %v769
        %v771 = vpop.f32.mrf.mxu0
        %v772 = vpop.f32.mrf.mxu0
        %v773 = vadd.f32 %v597, %v772
        %v774 = vpop.f32.mrf.mxu0
        %775 = vmatprep.mubr.bf16.mxu0 0
        %776 = vmatmul.mubr.bf16.gmra.mxu0 %v572
        %v777 = vpop.f32.mrf.mxu0
        %v778 = vadd.f32 %v597, %v777
        %v779 = vpop.f32.mrf.mxu0
        %v780 = vpop.f32.mrf.mxu0
        %v781 = vadd.f32 %v597, %v780
        %v782 = vpop.f32.mrf.mxu0
        %783 = vmatprep.mubr.bf16.mxu0 0
        %784 = vmatmul.mubr.bf16.gmra.mxu0 %v573
        %v785 = vpop.f32.mrf.mxu0
        %v786 = vadd.f32 %v597, %v785
        %v787 = vpop.f32.mrf.mxu0
        %v788 = vpop.f32.mrf.mxu0
        %v789 = vadd.f32 %v597, %v788
        %v790 = vpop.f32.mrf.mxu0
        %791 = vmatprep.mubr.bf16.mxu0 0
        %792 = vmatmul.mubr.bf16.gmra.mxu0 %v574
        %v793 = vpop.f32.mrf.mxu0
        %v794 = vadd.f32 %v597, %v793
        %v795 = vpop.f32.mrf.mxu0
        %v796 = vpop.f32.mrf.mxu0
        %v797 = vadd.f32 %v597, %v796
        %v798 = vpop.f32.mrf.mxu0
        %799 = vmatprep.mubr.bf16.mxu0 0
        %800 = vmatmul.mubr.bf16.gmra.mxu0 %v575
        %v801 = vpop.f32.mrf.mxu0
        %v802 = vadd.f32 %v597, %v801
        %v803 = vpop.f32.mrf.mxu0
        %v804 = vpop.f32.mrf.mxu0
        %v805 = vadd.f32 %v597, %v804
        %v806 = vpop.f32.mrf.mxu0
        %807 = vdwg.mxu0
        %vm808 = vcmask 64512
        %809 = vst.msk [vmem:[%s245] sm:$0xff] %vm808, %v682
        %810 = vst.msk [vmem:[%s245 + $0x8] sm:$0xff] %vm808, %v685
        %811 = vst.msk [vmem:[%s245 + $0x10] sm:$0xff] %vm808, %v690
        %812 = vst.msk [vmem:[%s245 + $0x18] sm:$0xff] %vm808, %v693
        %813 = vst.msk [vmem:[%s245 + $0x20] sm:$0xff] %vm808, %v698
        %814 = vst.msk [vmem:[%s245 + $0x28] sm:$0xff] %vm808, %v701
        %815 = vst.msk [vmem:[%s245 + $0x30] sm:$0xff] %vm808, %v706
        %816 = vst.msk [vmem:[%s245 + $0x38] sm:$0xff] %vm808, %v709
        %817 = vst.msk [vmem:[%s245 + $0x40] sm:$0xff] %vm808, %v714
        %818 = vst.msk [vmem:[%s245 + $0x48] sm:$0xff] %vm808, %v717
        %819 = vst.msk [vmem:[%s245 + $0x50] sm:$0xff] %vm808, %v722
        %820 = vst.msk [vmem:[%s245 + $0x58] sm:$0xff] %vm808, %v725
        %821 = vst.msk [vmem:[%s245 + $0x60] sm:$0xff] %vm808, %v730
        %822 = vst.msk [vmem:[%s245 + $0x68] sm:$0xff] %vm808, %v733
        %823 = vst.msk [vmem:[%s245 + $0x70] sm:$0xff] %vm808, %v738
        %824 = vst.msk [vmem:[%s245 + $0x78] sm:$0xff] %vm808, %v741
        %825 = vst.msk [vmem:[%s245 + $0x80] sm:$0xff] %vm808, %v746
        %826 = vst.msk [vmem:[%s245 + $0x88] sm:$0xff] %vm808, %v749
        %827 = vst.msk [vmem:[%s245 + $0x90] sm:$0xff] %vm808, %v754
        %828 = vst.msk [vmem:[%s245 + $0x98] sm:$0xff] %vm808, %v757
        %829 = vst.msk [vmem:[%s245 + $0xa0] sm:$0xff] %vm808, %v762
        %830 = vst.msk [vmem:[%s245 + $0xa8] sm:$0xff] %vm808, %v765
        %831 = vst.msk [vmem:[%s245 + $0xb0] sm:$0xff] %vm808, %v770
        %832 = vst.msk [vmem:[%s245 + $0xb8] sm:$0xff] %vm808, %v773
        %833 = vst.msk [vmem:[%s245 + $0xc0] sm:$0xff] %vm808, %v778
        %834 = vst.msk [vmem:[%s245 + $0xc8] sm:$0xff] %vm808, %v781
        %835 = vst.msk [vmem:[%s245 + $0xd0] sm:$0xff] %vm808, %v786
        %836 = vst.msk [vmem:[%s245 + $0xd8] sm:$0xff] %vm808, %v789
        %837 = vst.msk [vmem:[%s245 + $0xe0] sm:$0xff] %vm808, %v794
        %838 = vst.msk [vmem:[%s245 + $0xe8] sm:$0xff] %vm808, %v797
        %839 = vst.msk [vmem:[%s245 + $0xf0] sm:$0xff] %vm808, %v802
        %840 = vst.msk [vmem:[%s245 + $0xf8] sm:$0xff] %vm808, %v805
        %s841 = smul.u32 32, %s19
        %p842 = scmp.lt.s32.totalorder %s841, 63
        %s843 = scalar_select %p842, %s841, 63
        %s844 = smul.addr %s843, 8
        %s845 = scalar_lea.vmem %s5, %s844
        // Predicated region
        $region45: #{server_cnn_forward_pallas.1} parent=39 // pred_check
          %p846 = pneg %p147
        $region46: #{server_cnn_forward_pallas.1} parent=39 // pred_check_branch
          %848 = sbr.rel (%p846) target = $region48
        $region47: #{server_cnn_forward_pallas.1} parent=39 // pred_region
          %s849 = smul.u32 32, %s19
        $region48: #{server_cnn_forward_pallas.1} parent=39 // pred_fallthru
          _
      $region40: #{server_cnn_forward_pallas.1} parent=5 // pred_fallthru
        _
      %p850 = scmp.le.s32.totalorder 2, %s14
      // Predicated region
      $region49: #{server_cnn_forward_pallas.1} parent=5 // pred_check
        %p851 = pneg %p850
      $region50: #{server_cnn_forward_pallas.1} parent=5 // pred_check_branch
        %853 = sbr.rel (%p851) target = $region52
      $region51: #{server_cnn_forward_pallas.1} parent=5 // pred_region
        %s854 = ssub.s32 %s14, 2
        // Predicated region
        $region53: #{server_cnn_forward_pallas.1} parent=51 // pred_check
          %p855 = pneg %p153
        $region54: #{server_cnn_forward_pallas.1} parent=51 // pred_check_branch
          %857 = sbr.rel (%p855) target = $region56
        $region55: #{server_cnn_forward_pallas.1} parent=51 // pred_region
          %s858 = smul.u32 32, %s20
          %p859 = scmp.lt.s32.totalorder %s858, 63
          %s860 = scalar_select %p859, %s858, 63
          %s861 = smul.addr %s860, 8
          %s862 = scalar_lea.vmem %s5, %s861
        $region56: #{server_cnn_forward_pallas.1} parent=51 // pred_fallthru
          _
      $region52: #{server_cnn_forward_pallas.1} parent=5 // pred_fallthru
        _
    $region6: #{server_cnn_forward_pallas.1} parent=1 // loop_footer
      %s18 = sadd.s32 1, %s14
    $region7: #{server_cnn_forward_pallas.1} parent=1 // loop_footer_branch
      %13 = sbr.rel target = $region3
    $region8: #{server_cnn_forward_pallas.1} parent=1 // loop_exit
      _
    %863 = vsyncpa [#allocation3], 1
    %s864 = scalar_lea.sflag [#allocation3], 1
    %865 = vsyncpa %s864, 1

</llo_original>
